<compile_context>
chip_gen: v7x
topology: tpu7x:2x2x1
jax: 0.10.0
libtpu: 0.0.40
codegen_flags: <defaults>
</compile_context>

<pallas_src>
import functools

import jax
import jax.numpy as jnp
from jax.experimental import pallas as pl
from jax.experimental.pallas import tpu as pltpu

HIDDEN = 128


def _round_up(x, m):
    return (x + m - 1) // m * m


def dueling_kernel(x_ref, we_ref, be_ref, wh_ref, bh_ref, wo_ref, bo_ref,
                   o_ref, *, n_actions):
    # Embedding: Linear(obs_dim, 128) + ReLU. bf16 matmul, f32 epilogue.
    emb = jnp.dot(x_ref[...], we_ref[...], preferred_element_type=jnp.float32)
    emb = jnp.maximum(emb + be_ref[...], 0.0)

    # Fused v/a hidden layers: two Linear(128, 128) -> one (128, 256) matmul.
    h = jnp.dot(emb.astype(jnp.bfloat16), wh_ref[...],
                preferred_element_type=jnp.float32)
    h = jnp.maximum(h + bh_ref[...], 0.0)

    # Fused heads: block-diagonal (256, HEADW) matmul, HEADW padded to 128 so
    # both the matmul N-tile and the output store are lane-dense.
    #   columns [0, n_actions) : advantage head A
    #   column  n_actions      : value head V
    head = jnp.dot(h.astype(jnp.bfloat16), wo_ref[...],
                   preferred_element_type=jnp.float32)
    head = head + bo_ref[...]

    col = jax.lax.broadcasted_iota(jnp.int32, head.shape, 1)
    a_mask = col < n_actions
    v_mask = col == n_actions

    # Dueling aggregation: Q = V + (A - mean(A)). Row reduces go to the XLU,
    # which sits idle next to the MXU work -> effectively free.
    v = jnp.sum(jnp.where(v_mask, head, 0.0), axis=-1, keepdims=True)
    a_sum = jnp.sum(jnp.where(a_mask, head, 0.0), axis=-1, keepdims=True)
    a_mean = a_sum * (1.0 / n_actions)
    q = head + v - a_mean

    # Lane-dense (tile, 128) store; real Q values live in columns [0, n_actions).
    o_ref[...] = jnp.where(a_mask, q, 0.0).astype(o_ref.dtype)


def _pack_params(params, n_actions, head_w):
    """Fuse the torch-style per-layer params into the kernel's fused layout."""
    f32, bf16 = jnp.float32, jnp.bfloat16
    we = params["w_emb"].astype(bf16)
    be = params["b_emb"].reshape(1, -1).astype(f32)

    # Concatenated v/a hidden layer: (128, 256).
    wh = jnp.concatenate([params["w_v1"], params["w_a1"]], axis=1).astype(bf16)
    bh = jnp.concatenate([params["b_v1"], params["b_a1"]]).reshape(1, -1).astype(f32)

    # Block-diagonal fused head: (256, head_w), head_w = round_up(n_actions+1, 128).
    wo = jnp.zeros((2 * HIDDEN, head_w), f32)
    wo = wo.at[:HIDDEN, n_actions].set(params["w_v2"][:, 0])   # V column
    wo = wo.at[HIDDEN:, :n_actions].set(params["w_a2"])        # A columns
    wo = wo.astype(bf16)

    bo = jnp.zeros((1, head_w), f32)
    bo = bo.at[0, :n_actions].set(params["b_a2"])
    bo = bo.at[0, n_actions].set(params["b_v2"][0])
    return we, be, wh, bh, wo, bo


def dueling_forward(x, params, *, batch_tile=None):
    """x: (B, obs_dim) float32. params: dict (see init_params). Returns (B, n_actions) f32."""
    B, obs_dim = x.shape
    n_actions = params["w_a2"].shape[1]
    head_w = _round_up(n_actions + 1, 128)  # lane-dense padded head width

    # Batch tiling: 16-aligned (safe for bf16 sublane packing); default 512 rows
    # so large batches get many pipelined / megacore-shardable grid steps while
    # staying far under the scoped-VMEM defaults on every generation.
    if batch_tile is None:
        batch_tile = min(512, _round_up(B, 16))
    batch_tile = _round_up(batch_tile, 16)
    b_pad = _round_up(B, batch_tile)
    if b_pad != B:
        x = jnp.pad(x, ((0, b_pad - B), (0, 0)))

    x = x.astype(jnp.bfloat16)  # halves the streamed-activation DMA bytes
    we, be, wh, bh, wo, bo = _pack_params(params, n_actions, head_w)

    grid = (b_pad // batch_tile,)
    # Constant index_map -> weights/biases stay VMEM resident, no recurring DMA.
    # (They still get default 2-deep buffering; ~200 KiB total, acceptable.)
    full = lambda a: pl.BlockSpec(a.shape, lambda i: (0,) * a.ndim)

    out = pl.pallas_call(
        functools.partial(dueling_kernel, n_actions=n_actions),
        out_shape=jax.ShapeDtypeStruct((b_pad, head_w), jnp.float32),
        grid_spec=pltpu.PrefetchScalarGridSpec(
            num_scalar_prefetch=0,
            grid=grid,
            in_specs=[
                pl.BlockSpec((batch_tile, obs_dim), lambda i: (i, 0)),  # x tile
                full(we), full(be), full(wh), full(bh), full(wo), full(bo),
            ],
            out_specs=pl.BlockSpec((batch_tile, head_w), lambda i: (i, 0)),
        ),
        compiler_params=pltpu.CompilerParams(
            dimension_semantics=("parallel",),  # shard batch tiles across TCs (v7x)
        ),
    )(x, we, be, wh, bh, wo, bo)

    return out[:B, :n_actions]


def init_params(key, obs_dim, n_actions):
    """Deterministic He (kaiming-normal) init, matching init_type='he'."""
    ks = jax.random.split(key, 5)

    def he(k, fan_in, shape):
        return jax.random.normal(k, shape, jnp.float32) * jnp.sqrt(2.0 / fan_in)

    z = lambda n: jnp.zeros((n,), jnp.float32)
    return {
        "w_emb": he(ks[0], obs_dim, (obs_dim, HIDDEN)), "b_emb": z(HIDDEN),
        "w_v1": he(ks[1], HIDDEN, (HIDDEN, HIDDEN)),    "b_v1": z(HIDDEN),
        "w_v2": he(ks[2], HIDDEN, (HIDDEN, 1)),         "b_v2": z(1),
        "w_a1": he(ks[3], HIDDEN, (HIDDEN, HIDDEN)),    "b_a1": z(HIDDEN),
        "w_a2": he(ks[4], HIDDEN, (HIDDEN, n_actions)), "b_a2": z(n_actions),
    }


def reference_forward(x, p, *, matmul_dtype=jnp.float32):
    """Pure-JAX dueling forward (optionally emulating bf16 matmul inputs)."""
    dot = lambda a, b: jnp.dot(a.astype(matmul_dtype), b.astype(matmul_dtype),
                               preferred_element_type=jnp.float32)
    emb = jnp.maximum(dot(x, p["w_emb"]) + p["b_emb"], 0.0)
    hv = jnp.maximum(dot(emb, p["w_v1"]) + p["b_v1"], 0.0)
    ha = jnp.maximum(dot(emb, p["w_a1"]) + p["b_a1"], 0.0)
    v = dot(hv, p["w_v2"]) + p["b_v2"]
    a = dot(ha, p["w_a2"]) + p["b_a2"]
    return v + (a - jnp.mean(a, axis=1, keepdims=True))


if __name__ == "__main__":
    # Small shapes consistent with a flat-observation env:
    # batch=8, obs_dim=8, n_actions=4.
    B, OBS_DIM, N_ACTIONS = 8, 8, 4

    key = jax.random.PRNGKey(0)
    kx, kp = jax.random.split(key)
    x = jax.random.normal(kx, (B, OBS_DIM), jnp.float32)
    params = init_params(kp, OBS_DIM, N_ACTIONS)

    q = jax.block_until_ready(dueling_forward(x, params))
    assert q.shape == (B, N_ACTIONS)

    # Tight check against a bf16-matmul-emulating reference, loose check vs f32.
    q_bf16_ref = reference_forward(x, params, matmul_dtype=jnp.bfloat16)
    q_f32_ref = reference_forward(x, params)
    assert jnp.allclose(q, q_bf16_ref, atol=2e-3, rtol=2e-3), "mismatch vs bf16 reference"
    assert jnp.allclose(q, q_f32_ref, atol=5e-2, rtol=5e-2), "mismatch vs f32 reference"

    print("KERNEL_OK")
</pallas_src>

<mosaic_0001>
module attributes {stable_mosaic.version = 11 : i64} {
  func.func @dueling_kernel(%arg0: i32, %arg1: memref<16x8xbf16, #tpu.memory_space<vmem>>, %arg2: memref<8x128xbf16, #tpu.memory_space<vmem>>, %arg3: memref<1x128xf32, #tpu.memory_space<vmem>>, %arg4: memref<128x256xbf16, #tpu.memory_space<vmem>>, %arg5: memref<1x256xf32, #tpu.memory_space<vmem>>, %arg6: memref<256x128xbf16, #tpu.memory_space<vmem>>, %arg7: memref<1x128xf32, #tpu.memory_space<vmem>>, %arg8: memref<16x128xf32, #tpu.memory_space<vmem>>) attributes {dimension_semantics = [#tpu.dimension_semantics<parallel>], iteration_bounds = array<i64: 1>, scalar_prefetch = 0 : i64, scratch_operands = 0 : i64, tpu.core_type = #tpu.core_type<tc>, window_params = [{transform_indices = @transform_0, window_bounds = array<i64: 16, 8>}, {pipeline_mode = #tpu.pipeline_mode<synchronous>, transform_indices = @transform_1, window_bounds = array<i64: 8, 128>}, {pipeline_mode = #tpu.pipeline_mode<synchronous>, transform_indices = @transform_2, window_bounds = array<i64: 1, 128>}, {pipeline_mode = #tpu.pipeline_mode<synchronous>, transform_indices = @transform_3, window_bounds = array<i64: 128, 256>}, {pipeline_mode = #tpu.pipeline_mode<synchronous>, transform_indices = @transform_4, window_bounds = array<i64: 1, 256>}, {pipeline_mode = #tpu.pipeline_mode<synchronous>, transform_indices = @transform_5, window_bounds = array<i64: 256, 128>}, {pipeline_mode = #tpu.pipeline_mode<synchronous>, transform_indices = @transform_6, window_bounds = array<i64: 1, 128>}, {transform_indices = @transform_7, window_bounds = array<i64: 16, 128>}]} {
    %c0 = arith.constant 0 : index
    %c0_0 = arith.constant 0 : index
    %0 = vector.load %arg1[%c0, %c0_0] : memref<16x8xbf16, #tpu.memory_space<vmem>>, vector<16x8xbf16>
    %c0_1 = arith.constant 0 : index
    %c0_2 = arith.constant 0 : index
    %1 = vector.load %arg2[%c0_1, %c0_2] : memref<8x128xbf16, #tpu.memory_space<vmem>>, vector<8x128xbf16>
    %cst = arith.constant dense<0.000000e+00> : vector<16x128xf32>
    %2 = tpu.matmul %0, %1, %cst {dimension_numbers = #tpu.dot_dimension_numbers<[1], [0], [0], [1], [0, 0, 1, 1], [], []>} : vector<16x8xbf16>, vector<8x128xbf16>, vector<16x128xf32> -> vector<16x128xf32>
    %c0_3 = arith.constant 0 : index
    %c0_4 = arith.constant 0 : index
    %3 = vector.load %arg3[%c0_3, %c0_4] : memref<1x128xf32, #tpu.memory_space<vmem>>, vector<1x128xf32>
    %4 = vector.broadcast %3 : vector<1x128xf32> to vector<16x128xf32>
    %5 = arith.addf %2, %4 : vector<16x128xf32>
    %cst_5 = arith.constant 0.000000e+00 : f32
    %6 = vector.broadcast %cst_5 : f32 to vector<16x128xf32>
    %7 = arith.maximumf %5, %6 : vector<16x128xf32>
    %8 = arith.truncf %7 : vector<16x128xf32> to vector<16x128xbf16>
    %c0_6 = arith.constant 0 : index
    %c0_7 = arith.constant 0 : index
    %9 = vector.load %arg4[%c0_6, %c0_7] : memref<128x256xbf16, #tpu.memory_space<vmem>>, vector<128x256xbf16>
    %cst_8 = arith.constant dense<0.000000e+00> : vector<16x256xf32>
    %10 = tpu.matmul %8, %9, %cst_8 {dimension_numbers = #tpu.dot_dimension_numbers<[1], [0], [0], [1], [0, 0, 1, 1], [], []>} : vector<16x128xbf16>, vector<128x256xbf16>, vector<16x256xf32> -> vector<16x256xf32>
    %c0_9 = arith.constant 0 : index
    %c0_10 = arith.constant 0 : index
    %11 = vector.load %arg5[%c0_9, %c0_10] : memref<1x256xf32, #tpu.memory_space<vmem>>, vector<1x256xf32>
    %12 = vector.broadcast %11 : vector<1x256xf32> to vector<16x256xf32>
    %13 = arith.addf %10, %12 : vector<16x256xf32>
    %cst_11 = arith.constant 0.000000e+00 : f32
    %14 = vector.broadcast %cst_11 : f32 to vector<16x256xf32>
    %15 = arith.maximumf %13, %14 : vector<16x256xf32>
    %16 = arith.truncf %15 : vector<16x256xf32> to vector<16x256xbf16>
    %c0_12 = arith.constant 0 : index
    %c0_13 = arith.constant 0 : index
    %17 = vector.load %arg6[%c0_12, %c0_13] : memref<256x128xbf16, #tpu.memory_space<vmem>>, vector<256x128xbf16>
    %cst_14 = arith.constant dense<0.000000e+00> : vector<16x128xf32>
    %18 = tpu.matmul %16, %17, %cst_14 {dimension_numbers = #tpu.dot_dimension_numbers<[1], [0], [0], [1], [0, 0, 1, 1], [], []>} : vector<16x256xbf16>, vector<256x128xbf16>, vector<16x128xf32> -> vector<16x128xf32>
    %c0_15 = arith.constant 0 : index
    %c0_16 = arith.constant 0 : index
    %19 = vector.load %arg7[%c0_15, %c0_16] : memref<1x128xf32, #tpu.memory_space<vmem>>, vector<1x128xf32>
    %20 = vector.broadcast %19 : vector<1x128xf32> to vector<16x128xf32>
    %21 = arith.addf %18, %20 : vector<16x128xf32>
    %22 = tpu.iota {dimensions = array<i32: 1>} : vector<16x128xi32>
    %c4_i32 = arith.constant 4 : i32
    %23 = vector.broadcast %c4_i32 : i32 to vector<16x128xi32>
    %24 = arith.cmpi slt, %22, %23 : vector<16x128xi32>
    %c4_i32_17 = arith.constant 4 : i32
    %25 = vector.broadcast %c4_i32_17 : i32 to vector<16x128xi32>
    %26 = arith.cmpi eq, %22, %25 : vector<16x128xi32>
    %cst_18 = arith.constant 0.000000e+00 : f32
    %27 = vector.broadcast %cst_18 : f32 to vector<16x128xf32>
    %28 = arith.select %26, %21, %27 : vector<16x128xi1>, vector<16x128xf32>
    %cst_19 = arith.constant dense<0.000000e+00> : vector<16xf32>
    %29 = vector.multi_reduction <add>, %28, %cst_19 [1] : vector<16x128xf32> to vector<16xf32>
    %30 = vector.shape_cast %29 : vector<16xf32> to vector<16x1xf32>
    %cst_20 = arith.constant 0.000000e+00 : f32
    %31 = vector.broadcast %cst_20 : f32 to vector<16x128xf32>
    %32 = arith.select %24, %21, %31 : vector<16x128xi1>, vector<16x128xf32>
    %cst_21 = arith.constant dense<0.000000e+00> : vector<16xf32>
    %33 = vector.multi_reduction <add>, %32, %cst_21 [1] : vector<16x128xf32> to vector<16xf32>
    %34 = vector.shape_cast %33 : vector<16xf32> to vector<16x1xf32>
    %cst_22 = arith.constant 2.500000e-01 : f32
    %35 = vector.broadcast %cst_22 : f32 to vector<16x1xf32>
    %36 = arith.mulf %34, %35 : vector<16x1xf32>
    %37 = vector.broadcast %30 : vector<16x1xf32> to vector<16x128xf32>
    %38 = arith.addf %21, %37 : vector<16x128xf32>
    %39 = vector.broadcast %36 : vector<16x1xf32> to vector<16x128xf32>
    %40 = arith.subf %38, %39 : vector<16x128xf32>
    %cst_23 = arith.constant 0.000000e+00 : f32
    %41 = vector.broadcast %cst_23 : f32 to vector<16x128xf32>
    %42 = arith.select %24, %40, %41 : vector<16x128xi1>, vector<16x128xf32>
    %c0_24 = arith.constant 0 : index
    %c0_25 = arith.constant 0 : index
    %43 = vector.load %arg8[%c0_24, %c0_25] : memref<16x128xf32, #tpu.memory_space<vmem>>, vector<16x128xf32>
    tpu.vector_store %arg8[%c0_24, %c0_25], %42 {strides = array<i32>} : memref<16x128xf32, #tpu.memory_space<vmem>>, vector<16x128xf32>,
    return
  }
  func.func @transform_0(%arg0: i32) -> (i32, i32) {
    %c0_i32 = arith.constant 0 : i32
    %c0_i32_0 = arith.constant 0 : i32
    return %arg0, %c0_i32 : i32, i32
  }
  func.func @transform_1(%arg0: i32) -> (i32, i32) {
    %c0_i32 = arith.constant 0 : i32
    %c0_i32_0 = arith.constant 0 : i32
    %c0_i32_1 = arith.constant 0 : i32
    return %c0_i32, %c0_i32_0 : i32, i32
  }
  func.func @transform_2(%arg0: i32) -> (i32, i32) {
    %c0_i32 = arith.constant 0 : i32
    %c0_i32_0 = arith.constant 0 : i32
    %c0_i32_1 = arith.constant 0 : i32
    return %c0_i32, %c0_i32_0 : i32, i32
  }
  func.func @transform_3(%arg0: i32) -> (i32, i32) {
    %c0_i32 = arith.constant 0 : i32
    %c0_i32_0 = arith.constant 0 : i32
    %c0_i32_1 = arith.constant 0 : i32
    return %c0_i32, %c0_i32_0 : i32, i32
  }
  func.func @transform_4(%arg0: i32) -> (i32, i32) {
    %c0_i32 = arith.constant 0 : i32
    %c0_i32_0 = arith.constant 0 : i32
    %c0_i32_1 = arith.constant 0 : i32
    return %c0_i32, %c0_i32_0 : i32, i32
  }
  func.func @transform_5(%arg0: i32) -> (i32, i32) {
    %c0_i32 = arith.constant 0 : i32
    %c0_i32_0 = arith.constant 0 : i32
    %c0_i32_1 = arith.constant 0 : i32
    return %c0_i32, %c0_i32_0 : i32, i32
  }
  func.func @transform_6(%arg0: i32) -> (i32, i32) {
    %c0_i32 = arith.constant 0 : i32
    %c0_i32_0 = arith.constant 0 : i32
    %c0_i32_1 = arith.constant 0 : i32
    return %c0_i32, %c0_i32_0 : i32, i32
  }
  func.func @transform_7(%arg0: i32) -> (i32, i32) {
    %c0_i32 = arith.constant 0 : i32
    %c0_i32_0 = arith.constant 0 : i32
    return %arg0, %c0_i32 : i32, i32
  }
}

</mosaic_0001>

<llo_original>
// kernel: tpu_custom_call.1
$region0: #{tpu_custom_call.1}
  #allocation0 [shape = 'u32[]', space=smem, size = 0x4, offset = 0x4, fixed_abs, tag = 'smem constant byte address 0x4 - core index']
  #allocation1 [shape = 'u32[144,128]{1,0:T(1,128)}', space=vmem, size = 0x12000, scoped, tag = 'internal scratch']
  %s0 = inlined_call_operand.vmem [shape: bf16[16,8], index: 0, kind: input, shape index: {}]
  %s1 = inlined_call_operand.vmem [shape: bf16[8,128], index: 1, kind: input, shape index: {}]
  %s2 = inlined_call_operand.vmem [shape: f32[1,128], index: 2, kind: input, shape index: {}]
  %s3 = inlined_call_operand.hbm [shape: bf16[128,256], index: 3, kind: input, shape index: {}]
  %s4 = inlined_call_operand.vmem [shape: f32[1,256], index: 4, kind: input, shape index: {}]
  %s5 = inlined_call_operand.hbm [shape: bf16[256,128], index: 5, kind: input, shape index: {}]
  %s6 = inlined_call_operand.vmem [shape: f32[1,128], index: 6, kind: input, shape index: {}]
  %s7 = inlined_call_operand.hbm [shape: f32[16,128], index: 7, kind: output, shape index: {}]
  %s8 = sld [smem:[#allocation0]]
  $region46: #{tpu_custom_call.1} parent=0
    _
  %s10 = ssub.s32 1, %s8
  %s11 = scalar_select 0, %s10, %s8
  $region1: #{tpu_custom_call.1} parent=0
    #allocation2 [shape = 'u8[65536]{0}', space=vmem, size = 0x10000, scoped, tag = 'input window, operand 3, single buffered']
    #allocation3 [shape = 's32[1]{0}', space=sflag, size = 0x4, scoped, tag = 'scoped memory for tpu_custom_call.1']
    #allocation4 [shape = 's32[1]{0}', space=sflag, size = 0x4, scoped, tag = 'scoped memory for tpu_custom_call.1']
    #allocation5 [shape = 'u8[65536]{0}', space=vmem, size = 0x10000, scoped, tag = 'input window, operand 5, single buffered']
    #allocation6 [shape = 's32[1]{0}', space=sflag, size = 0x4, scoped, tag = 'scoped memory for tpu_custom_call.1']
    #allocation7 [shape = 'u8[8192]{0}', space=vmem, size = 0x2000, scoped, tag = 'output window, operand 0, single buffered']
    %12 = vsyncpa [#allocation3], 0
    %13 = vsyncpa [#allocation6], 0
    %14 = vsyncpa [#allocation4], 0
    // Predicated region
    $region2: #{tpu_custom_call.1} parent=1 // pred_check
      _
    $region3: #{tpu_custom_call.1} parent=1 // pred_check_branch
      %16 = sbr.rel (0) target = $region5
    $region4: #{tpu_custom_call.1} parent=1 // pred_region
      _
    $region5: #{tpu_custom_call.1} parent=1 // pred_fallthru
      _
    // Predicated region
    $region6: #{tpu_custom_call.1} parent=1 // pred_check
      _
    $region7: #{tpu_custom_call.1} parent=1 // pred_check_branch
      %18 = sbr.rel (0) target = $region9
    $region8: #{tpu_custom_call.1} parent=1 // pred_region
      _
    $region9: #{tpu_custom_call.1} parent=1 // pred_fallthru
      _
    // Predicated region
    $region10: #{tpu_custom_call.1} parent=1 // pred_check
      _
    $region11: #{tpu_custom_call.1} parent=1 // pred_check_branch
      %20 = sbr.rel (0) target = $region13
    $region12: #{tpu_custom_call.1} parent=1 // pred_region
      _
    $region13: #{tpu_custom_call.1} parent=1 // pred_fallthru
      _
    // Predicated region
    $region14: #{tpu_custom_call.1} parent=1 // pred_check
      _
    $region15: #{tpu_custom_call.1} parent=1 // pred_check_branch
      %22 = sbr.rel (0) target = $region17
    $region16: #{tpu_custom_call.1} parent=1 // pred_region
      %s24 = ssub.s32 2048, 2048
      %25 = vsyncadd [#allocation3], %s24
      %s26 = sshll.u32 [#allocation2], 4
      %s27 = int_to_ptr.vmem [resolvable:$true] %s26
      %32 = dma.hbm_to_vmem [thread:$0]  %s3, 2048, %s27, [#allocation3], 128, 128, 8
    $region17: #{tpu_custom_call.1} parent=1 // pred_fallthru
      _
    // Predicated region
    $region18: #{tpu_custom_call.1} parent=1 // pred_check
      _
    $region19: #{tpu_custom_call.1} parent=1 // pred_check_branch
      %34 = sbr.rel (0) target = $region21
    $region20: #{tpu_custom_call.1} parent=1 // pred_region
      _
    $region21: #{tpu_custom_call.1} parent=1 // pred_fallthru
      _
    // Predicated region
    $region22: #{tpu_custom_call.1} parent=1 // pred_check
      _
    $region23: #{tpu_custom_call.1} parent=1 // pred_check_branch
      %36 = sbr.rel (0) target = $region25
    $region24: #{tpu_custom_call.1} parent=1 // pred_region
      %s38 = ssub.s32 2048, 2048
      %39 = vsyncadd [#allocation6], %s38
      %s40 = sshll.u32 [#allocation5], 4
      %s41 = int_to_ptr.vmem [resolvable:$true] %s40
      %46 = dma.hbm_to_vmem [thread:$0]  %s5, 2048, %s41, [#allocation6], 64, 64, 4
    $region25: #{tpu_custom_call.1} parent=1 // pred_fallthru
      _
    // Predicated region
    $region26: #{tpu_custom_call.1} parent=1 // pred_check
      _
    $region27: #{tpu_custom_call.1} parent=1 // pred_check_branch
      %48 = sbr.rel (0) target = $region29
    $region28: #{tpu_custom_call.1} parent=1 // pred_region
      _
    $region29: #{tpu_custom_call.1} parent=1 // pred_fallthru
      _
    // Predicated region
    $region30: #{tpu_custom_call.1} parent=1 // pred_check
      _
    $region31: #{tpu_custom_call.1} parent=1 // pred_check_branch
      %50 = sbr.rel (0) target = $region33
    $region32: #{tpu_custom_call.1} parent=1 // pred_region
      %51 = dma.done [#allocation3], 2048
    $region33: #{tpu_custom_call.1} parent=1 // pred_fallthru
      _
    // Predicated region
    $region34: #{tpu_custom_call.1} parent=1 // pred_check
      _
    $region35: #{tpu_custom_call.1} parent=1 // pred_check_branch
      %53 = sbr.rel (0) target = $region37
    $region36: #{tpu_custom_call.1} parent=1 // pred_region
      %54 = dma.done [#allocation6], 2048
    $region37: #{tpu_custom_call.1} parent=1 // pred_fallthru
      _
    %v56 = vld [vmem:[%s0] sm:$0xf]
    %v57 = vld [vmem:[%s0 + $0x4] sm:$0xf]
    %v58 = vld [vmem:[%s1] sm:$0xf]
    %v59 = vld [vmem:[%s2] sm:$0x1]
    %v61 = vlaneseq
    %v62 = vshrl.u32 %v61, 7
    %v63 = vsub.s32 0, %v62
    %v64 = vrot.slane %v59, %v63
    %v68 = vunpack.c.l.b16 %v56
    %v69 = vunpack.c.l.b16 %v57
    %v70 = vpack.c.b16 %v69, %v68
    %vm71 = vcmask 64512
    %v73 = vsel %vm71, %v70, 0
    %vm75 = vcmask 1043456
    %v77 = vsel %vm75, %v58, 0
    %79 = vmatprep.subr.bf16.mxu0 0
    %80 = vmatpush1.bf16.msra.mxu0 %v77
    %81 = vmatprep.subr.bf16.mxu0 0
    %82 = vmatpush1.bf16.msra.mxu0 0
    %83 = vmatprep.subr.bf16.mxu0 0
    %84 = vmatpush1.bf16.msra.mxu0 0
    %85 = vmatprep.subr.bf16.mxu0 0
    %86 = vmatpush1.bf16.msra.mxu0 0
    %87 = vmatprep.subr.bf16.mxu0 0
    %88 = vmatpush1.bf16.msra.mxu0 0
    %89 = vmatprep.subr.bf16.mxu0 0
    %90 = vmatpush1.bf16.msra.mxu0 0
    %91 = vmatprep.subr.bf16.mxu0 0
    %92 = vmatpush1.bf16.msra.mxu0 0
    %93 = vmatprep.subr.bf16.mxu0 0
    %94 = vmatpush1.bf16.msra.mxu0 0
    %95 = vmatprep.subr.bf16.mxu0 0
    %96 = vmatpush1.bf16.msra.mxu0 0
    %97 = vmatprep.subr.bf16.mxu0 0
    %98 = vmatpush1.bf16.msra.mxu0 0
    %99 = vmatprep.subr.bf16.mxu0 0
    %100 = vmatpush1.bf16.msra.mxu0 0
    %101 = vmatprep.subr.bf16.mxu0 0
    %102 = vmatpush1.bf16.msra.mxu0 0
    %103 = vmatprep.subr.bf16.mxu0 0
    %104 = vmatpush1.bf16.msra.mxu0 0
    %105 = vmatprep.subr.bf16.mxu0 0
    %106 = vmatpush1.bf16.msra.mxu0 0
    %107 = vmatprep.subr.bf16.mxu0 0
    %108 = vmatpush1.bf16.msra.mxu0 0
    %109 = vmatprep.subr.bf16.mxu0 0
    %110 = vmatpush1.bf16.msra.mxu0 0
    %111 = vmatprep.mubr.bf16.mxu0 0
    %112 = vmatmul.mubr.bf16.gmra.mrb[0].mxu0 %v73
    %v113 = vpop.f32.mrb[0].mxu0
    %v114 = vadd.f32 %v64, %v113
    %v115 = vpop.f32.mrb[0].mxu0
    %v116 = vpop.f32.mrb[0].mxu0
    %v117 = vadd.f32 %v64, %v116
    %v118 = vpop.f32.mrb[0].mxu0
    %119 = vdwg.mxu0
    %v120 = vmax.f32 %v114, 0.0
    %v121 = vmax.f32 %v117, 0.0
    %v122 = vpack.c.bf16 %v121, %v120
    %v123 = vld [vmem:[#allocation2] sm:$0xff]
    %v124 = vld [vmem:[#allocation2 + $0x8] sm:$0xff]
    %v125 = vld [vmem:[#allocation2 + $0x10] sm:$0xff]
    %v126 = vld [vmem:[#allocation2 + $0x18] sm:$0xff]
    %v127 = vld [vmem:[#allocation2 + $0x20] sm:$0xff]
    %v128 = vld [vmem:[#allocation2 + $0x28] sm:$0xff]
    %v129 = vld [vmem:[#allocation2 + $0x30] sm:$0xff]
    %v130 = vld [vmem:[#allocation2 + $0x38] sm:$0xff]
    %v131 = vld [vmem:[#allocation2 + $0x40] sm:$0xff]
    %v132 = vld [vmem:[#allocation2 + $0x48] sm:$0xff]
    %v133 = vld [vmem:[#allocation2 + $0x50] sm:$0xff]
    %v134 = vld [vmem:[#allocation2 + $0x58] sm:$0xff]
    %v135 = vld [vmem:[#allocation2 + $0x60] sm:$0xff]
    %v136 = vld [vmem:[#allocation2 + $0x68] sm:$0xff]
    %v137 = vld [vmem:[#allocation2 + $0x70] sm:$0xff]
    %v138 = vld [vmem:[#allocation2 + $0x78] sm:$0xff]
    %v139 = vld [vmem:[%s4] sm:$0x3]
    %v141 = vlaneseq
    %v142 = vshrl.u32 %v141, 7
    %v143 = vsub.s32 0, %v142
    %v144 = vrot.slane %v139, %v143
    %v145 = vlaneseq
    %v146 = vshrl.u32 %v145, 7
    %v147 = vsub.s32 1, %v146
    %v148 = vrot.slane %v139, %v147
    %v167 = vunpack.c.l.b16 %v123
    %v168 = vunpack.c.h.b16 %v123
    %v169 = vunpack.c.l.b16 %v124
    %v170 = vunpack.c.h.b16 %v124
    %v171 = vunpack.c.l.b16 %v125
    %v172 = vunpack.c.h.b16 %v125
    %v173 = vunpack.c.l.b16 %v126
    %v174 = vunpack.c.h.b16 %v126
    %v175 = vunpack.c.l.b16 %v127
    %v176 = vunpack.c.h.b16 %v127
    %v177 = vunpack.c.l.b16 %v128
    %v178 = vunpack.c.h.b16 %v128
    %v179 = vunpack.c.l.b16 %v129
    %v180 = vunpack.c.h.b16 %v129
    %v181 = vunpack.c.l.b16 %v130
    %v182 = vunpack.c.h.b16 %v130
    %v183 = vunpack.c.l.b16 %v131
    %v184 = vunpack.c.h.b16 %v131
    %v185 = vunpack.c.l.b16 %v132
    %v186 = vunpack.c.h.b16 %v132
    %v187 = vunpack.c.l.b16 %v133
    %v188 = vunpack.c.h.b16 %v133
    %v189 = vunpack.c.l.b16 %v134
    %v190 = vunpack.c.h.b16 %v134
    %v191 = vunpack.c.l.b16 %v135
    %v192 = vunpack.c.h.b16 %v135
    %v193 = vunpack.c.l.b16 %v136
    %v194 = vunpack.c.h.b16 %v136
    %v195 = vunpack.c.l.b16 %v137
    %v196 = vunpack.c.h.b16 %v137
    %v197 = vunpack.c.l.b16 %v138
    %v198 = vunpack.c.h.b16 %v138
    %v199 = vpack.c.b16 %v169, %v167
    %v200 = vpack.c.b16 %v170, %v168
    %v201 = vpack.c.b16 %v173, %v171
    %v202 = vpack.c.b16 %v174, %v172
    %v203 = vpack.c.b16 %v177, %v175
    %v204 = vpack.c.b16 %v178, %v176
    %v205 = vpack.c.b16 %v181, %v179
    %v206 = vpack.c.b16 %v182, %v180
    %v207 = vpack.c.b16 %v185, %v183
    %v208 = vpack.c.b16 %v186, %v184
    %v209 = vpack.c.b16 %v189, %v187
    %v210 = vpack.c.b16 %v190, %v188
    %v211 = vpack.c.b16 %v193, %v191
    %v212 = vpack.c.b16 %v194, %v192
    %v213 = vpack.c.b16 %v197, %v195
    %v214 = vpack.c.b16 %v198, %v196
    %231 = vmatprep.subr.bf16.mxu0 %v200
    %232 = vmatpush1.bf16.msra.mxu0 %v199
    %233 = vmatprep.subr.bf16.mxu0 %v202
    %234 = vmatpush1.bf16.msra.mxu0 %v201
    %235 = vmatprep.subr.bf16.mxu0 %v204
    %236 = vmatpush1.bf16.msra.mxu0 %v203
    %237 = vmatprep.subr.bf16.mxu0 %v206
    %238 = vmatpush1.bf16.msra.mxu0 %v205
    %239 = vmatprep.subr.bf16.mxu0 %v208
    %240 = vmatpush1.bf16.msra.mxu0 %v207
    %241 = vmatprep.subr.bf16.mxu0 %v210
    %242 = vmatpush1.bf16.msra.mxu0 %v209
    %243 = vmatprep.subr.bf16.mxu0 %v212
    %244 = vmatpush1.bf16.msra.mxu0 %v211
    %245 = vmatprep.subr.bf16.mxu0 %v214
    %246 = vmatpush1.bf16.msra.mxu0 %v213
    %247 = vmatprep.subr.bf16.mxu0 0
    %248 = vmatpush1.bf16.msra.mxu0 0
    %249 = vmatprep.subr.bf16.mxu0 0
    %250 = vmatpush1.bf16.msra.mxu0 0
    %251 = vmatprep.subr.bf16.mxu0 0
    %252 = vmatpush1.bf16.msra.mxu0 0
    %253 = vmatprep.subr.bf16.mxu0 0
    %254 = vmatpush1.bf16.msra.mxu0 0
    %255 = vmatprep.subr.bf16.mxu0 0
    %256 = vmatpush1.bf16.msra.mxu0 0
    %257 = vmatprep.subr.bf16.mxu0 0
    %258 = vmatpush1.bf16.msra.mxu0 0
    %259 = vmatprep.subr.bf16.mxu0 0
    %260 = vmatpush1.bf16.msra.mxu0 0
    %261 = vmatprep.subr.bf16.mxu0 0
    %262 = vmatpush1.bf16.msra.mxu0 0
    %263 = vmatprep.mubr.bf16.mxu0 0
    %264 = vmatmul.mubr.bf16.gmra.mrb[0].mxu0 %v122
    %v265 = vpop.f32.mrb[0].mxu0
    %v266 = vadd.f32 %v144, %v265
    %v267 = vpop.f32.mrb[0].mxu0
    %v268 = vadd.f32 %v148, %v267
    %v269 = vpop.f32.mrb[0].mxu0
    %v270 = vadd.f32 %v144, %v269
    %v271 = vpop.f32.mrb[0].mxu0
    %v272 = vadd.f32 %v148, %v271
    %273 = vdwg.mxu0
    %v274 = vmax.f32 %v266, 0.0
    %v275 = vmax.f32 %v268, 0.0
    %v276 = vmax.f32 %v270, 0.0
    %v277 = vmax.f32 %v272, 0.0
    %v278 = vpack.c.bf16 %v276, %v274
    %v279 = vpack.c.bf16 %v277, %v275
    %v280 = vld [vmem:[#allocation5] sm:$0xf]
    %v281 = vld [vmem:[#allocation5 + $0x4] sm:$0xf]
    %v282 = vld [vmem:[#allocation5 + $0x8] sm:$0xf]
    %v283 = vld [vmem:[#allocation5 + $0xc] sm:$0xf]
    %v284 = vld [vmem:[#allocation5 + $0x10] sm:$0xf]
    %v285 = vld [vmem:[#allocation5 + $0x14] sm:$0xf]
    %v286 = vld [vmem:[#allocation5 + $0x18] sm:$0xf]
    %v287 = vld [vmem:[#allocation5 + $0x1c] sm:$0xf]
    %v288 = vld [vmem:[#allocation5 + $0x20] sm:$0xf]
    %v289 = vld [vmem:[#allocation5 + $0x24] sm:$0xf]
    %v290 = vld [vmem:[#allocation5 + $0x28] sm:$0xf]
    %v291 = vld [vmem:[#allocation5 + $0x2c] sm:$0xf]
    %v292 = vld [vmem:[#allocation5 + $0x30] sm:$0xf]
    %v293 = vld [vmem:[#allocation5 + $0x34] sm:$0xf]
    %v294 = vld [vmem:[#allocation5 + $0x38] sm:$0xf]
    %v295 = vld [vmem:[#allocation5 + $0x3c] sm:$0xf]
    %v296 = vld [vmem:[#allocation5 + $0x40] sm:$0xf]
    %v297 = vld [vmem:[#allocation5 + $0x44] sm:$0xf]
    %v298 = vld [vmem:[#allocation5 + $0x48] sm:$0xf]
    %v299 = vld [vmem:[#allocation5 + $0x4c] sm:$0xf]
    %v300 = vld [vmem:[#allocation5 + $0x50] sm:$0xf]
    %v301 = vld [vmem:[#allocation5 + $0x54] sm:$0xf]
    %v302 = vld [vmem:[#allocation5 + $0x58] sm:$0xf]
    %v303 = vld [vmem:[#allocation5 + $0x5c] sm:$0xf]
    %v304 = vld [vmem:[#allocation5 + $0x60] sm:$0xf]
    %v305 = vld [vmem:[#allocation5 + $0x64] sm:$0xf]
    %v306 = vld [vmem:[#allocation5 + $0x68] sm:$0xf]
    %v307 = vld [vmem:[#allocation5 + $0x6c] sm:$0xf]
    %v308 = vld [vmem:[#allocation5 + $0x70] sm:$0xf]
    %v309 = vld [vmem:[#allocation5 + $0x74] sm:$0xf]
    %v310 = vld [vmem:[#allocation5 + $0x78] sm:$0xf]
    %v311 = vld [vmem:[#allocation5 + $0x7c] sm:$0xf]
    %v312 = vld [vmem:[%s6] sm:$0x1]
    %v314 = vlaneseq
    %v315 = vshrl.u32 %v314, 7
    %v316 = vsub.s32 0, %v315
    %v317 = vrot.slane %v312, %v316
    %v351 = vunpack.c.l.b16 %v280
    %v352 = vunpack.c.l.b16 %v281
    %v353 = vunpack.c.l.b16 %v282
    %v354 = vunpack.c.l.b16 %v283
    %v355 = vunpack.c.l.b16 %v284
    %v356 = vunpack.c.l.b16 %v285
    %v357 = vunpack.c.l.b16 %v286
    %v358 = vunpack.c.l.b16 %v287
    %v359 = vunpack.c.l.b16 %v288
    %v360 = vunpack.c.l.b16 %v289
    %v361 = vunpack.c.l.b16 %v290
    %v362 = vunpack.c.l.b16 %v291
    %v363 = vunpack.c.l.b16 %v292
    %v364 = vunpack.c.l.b16 %v293
    %v365 = vunpack.c.l.b16 %v294
    %v366 = vunpack.c.l.b16 %v295
    %v367 = vunpack.c.l.b16 %v296
    %v368 = vunpack.c.l.b16 %v297
    %v369 = vunpack.c.l.b16 %v298
    %v370 = vunpack.c.l.b16 %v299
    %v371 = vunpack.c.l.b16 %v300
    %v372 = vunpack.c.l.b16 %v301
    %v373 = vunpack.c.l.b16 %v302
    %v374 = vunpack.c.l.b16 %v303
    %v375 = vunpack.c.l.b16 %v304
    %v376 = vunpack.c.l.b16 %v305
    %v377 = vunpack.c.l.b16 %v306
    %v378 = vunpack.c.l.b16 %v307
    %v379 = vunpack.c.l.b16 %v308
    %v380 = vunpack.c.l.b16 %v309
    %v381 = vunpack.c.l.b16 %v310
    %v382 = vunpack.c.l.b16 %v311
    %v383 = vpack.c.b16 %v352, %v351
    %v384 = vpack.c.b16 %v354, %v353
    %v385 = vpack.c.b16 %v356, %v355
    %v386 = vpack.c.b16 %v358, %v357
    %v387 = vpack.c.b16 %v360, %v359
    %v388 = vpack.c.b16 %v362, %v361
    %v389 = vpack.c.b16 %v364, %v363
    %v390 = vpack.c.b16 %v366, %v365
    %v391 = vpack.c.b16 %v368, %v367
    %v392 = vpack.c.b16 %v370, %v369
    %v393 = vpack.c.b16 %v372, %v371
    %v394 = vpack.c.b16 %v374, %v373
    %v395 = vpack.c.b16 %v376, %v375
    %v396 = vpack.c.b16 %v378, %v377
    %v397 = vpack.c.b16 %v380, %v379
    %v398 = vpack.c.b16 %v382, %v381
    %415 = vmatprep.subr.bf16.mxu0 0
    %416 = vmatpush1.bf16.msra.mxu0 %v383
    %417 = vmatprep.subr.bf16.mxu0 0
    %418 = vmatpush1.bf16.msra.mxu0 %v384
    %419 = vmatprep.subr.bf16.mxu0 0
    %420 = vmatpush1.bf16.msra.mxu0 %v385
    %421 = vmatprep.subr.bf16.mxu0 0
    %422 = vmatpush1.bf16.msra.mxu0 %v386
    %423 = vmatprep.subr.bf16.mxu0 0
    %424 = vmatpush1.bf16.msra.mxu0 %v387
    %425 = vmatprep.subr.bf16.mxu0 0
    %426 = vmatpush1.bf16.msra.mxu0 %v388
    %427 = vmatprep.subr.bf16.mxu0 0
    %428 = vmatpush1.bf16.msra.mxu0 %v389
    %429 = vmatprep.subr.bf16.mxu0 0
    %430 = vmatpush1.bf16.msra.mxu0 %v390
    %431 = vmatprep.subr.bf16.mxu0 0
    %432 = vmatpush1.bf16.msra.mxu0 %v391
    %433 = vmatprep.subr.bf16.mxu0 0
    %434 = vmatpush1.bf16.msra.mxu0 %v392
    %435 = vmatprep.subr.bf16.mxu0 0
    %436 = vmatpush1.bf16.msra.mxu0 %v393
    %437 = vmatprep.subr.bf16.mxu0 0
    %438 = vmatpush1.bf16.msra.mxu0 %v394
    %439 = vmatprep.subr.bf16.mxu0 0
    %440 = vmatpush1.bf16.msra.mxu0 %v395
    %441 = vmatprep.subr.bf16.mxu0 0
    %442 = vmatpush1.bf16.msra.mxu0 %v396
    %443 = vmatprep.subr.bf16.mxu0 0
    %444 = vmatpush1.bf16.msra.mxu0 %v397
    %445 = vmatprep.subr.bf16.mxu0 0
    %446 = vmatpush1.bf16.msra.mxu0 %v398
    %447 = vmatprep.mubr.bf16.mxu0 %v279
    %448 = vmatmul.mubr.bf16.gmra.mrb[0].mxu0 %v278
    %v449 = vpop.f32.mrb[0].mxu0
    %v450 = vadd.f32 %v317, %v449
    %v451 = vpop.f32.mrb[0].mxu0
    %v452 = vpop.f32.mrb[0].mxu0
    %v453 = vadd.f32 %v317, %v452
    %v454 = vpop.f32.mrb[0].mxu0
    %455 = vdwg.mxu0
    %v456 = vlaneseq
    %v457 = vand.u32 %v456, 127
    %vm458 = vcmp.lt.s32.totalorder %v457, 4
    %vm459 = vcmp.eq.s32.totalorder %v457, 4
    %v460 = vsel %vm459, %v450, 0.0
    %v461 = vsel %vm459, %v453, 0.0
    %462 = vadd.xlane.f32.xlu0 %v460
    %v463 = vpop.xlane.xlu0 %462
    %464 = vadd.xlane.f32.xlu0 %v461
    %v465 = vpop.xlane.xlu0 %464
    %v466 = vsel %vm458, %v450, 0.0
    %v467 = vsel %vm458, %v453, 0.0
    %468 = vadd.xlane.f32.xlu0 %v466
    %v469 = vpop.xlane.xlu0 %468
    %470 = vadd.xlane.f32.xlu0 %v467
    %v471 = vpop.xlane.xlu0 %470
    %v472 = vmul.f32 %v469, 0.25
    %v473 = vmul.f32 %v471, 0.25
    %v474 = vadd.f32 %v450, %v463
    %v475 = vadd.f32 %v453, %v465
    %v476 = vsub.f32 %v474, %v472
    %v477 = vsub.f32 %v475, %v473
    %v478 = vsel %vm458, %v476, 0.0
    %v479 = vsel %vm458, %v477, 0.0
    %480 = vst [vmem:[#allocation7] sm:$0xff] %v478
    %481 = vst [vmem:[#allocation7 + $0x8] sm:$0xff] %v479
    // Predicated region
    $region38: #{tpu_custom_call.1} parent=1 // pred_check
      _
    $region39: #{tpu_custom_call.1} parent=1 // pred_check_branch
      %483 = sbr.rel (0) target = $region41
    $region40: #{tpu_custom_call.1} parent=1 // pred_region
      %s485 = ssub.s32 256, 256
      %486 = vsyncadd [#allocation4], %s485
      %s487 = sshll.u32 [#allocation7], 4
      %s488 = int_to_ptr.vmem [resolvable:$true] %s487
      %493 = dma.vmem_to_hbm [thread:$0]  %s488, 256, %s7, [#allocation4], 128, 128, 8
    $region41: #{tpu_custom_call.1} parent=1 // pred_fallthru
      _
    // Predicated region
    $region42: #{tpu_custom_call.1} parent=1 // pred_check
      _
    $region43: #{tpu_custom_call.1} parent=1 // pred_check_branch
      %495 = sbr.rel (0) target = $region45
    $region44: #{tpu_custom_call.1} parent=1 // pred_region
      %496 = dma.done [#allocation4], 256
    $region45: #{tpu_custom_call.1} parent=1 // pred_fallthru
      _
    %497 = vsyncpa [#allocation3], 1
    %498 = vsyncpa [#allocation6], 1
    %499 = vsyncpa [#allocation4], 1

</llo_original>
